<compile_context>
chip_gen: v7x
topology: tpu7x:2x2x1
jax: 0.10.0
libtpu: 0.0.40
codegen_flags: <defaults>
</compile_context>

<pallas_src>
import functools

import jax
import jax.numpy as jnp
from jax.experimental import pallas as pl
from jax.experimental.pallas import tpu as pltpu


def _round_up(x, m):
    return ((x + m - 1) // m) * m


def _tpu_vmem_bytes():
    """Physical VMEM per core (128 MiB on v5e/v6e, 64 MiB on v7x)."""
    try:
        return int(pltpu.get_tpu_info().vmem_capacity_bytes)
    except Exception:
        return 128 << 20


def _vmem_limit(need_bytes, vmem_bytes):
    """Scoped-VMEM limit: enough for the kernel, never above physical-headroom."""
    cap = vmem_bytes - (12 << 20)                 # ~52 MiB on v7x, 116 on v5e/v6e
    return int(max(min(need_bytes + (8 << 20), cap), min(32 << 20, cap)))


# ---------------------------------------------------------------------------
# Whole-S, small-C kernel: x folded to (C, S/128, 128) dense slabs,
# projections as VPU scalar-broadcast FMAs with SMEM weights (no MXU push).
# ---------------------------------------------------------------------------
def _ctx_whole_vpu_kernel(x_ref, wakv_ref, bakv_ref, wm_ref, bm_ref, o_ref,
                          *, c_in, ci):
    nrows = 2 + ci                                # [a; k; v_0 .. v_{ci-1}]
    acc = [None] * nrows
    # One pass over channels: each x[c] slab is read once and feeds
    # (2 + Ci) broadcast-FMAs on the VPU; weights are SMEM scalars.
    for c in range(c_in):
        xc = x_ref[0, c]                          # (S/128, 128)
        for r in range(nrows):
            t = wakv_ref[r, c] * xc
            acc[r] = t if acc[r] is None else acc[r] + t

    a = jax.nn.sigmoid(acc[0] + bakv_ref[0])      # gate, (S/128, 128)
    k_log = acc[1] + bakv_ref[1]
    k_max = jnp.max(k_log, keepdims=True)         # (1, 1)
    k_exp = jnp.exp(k_log - k_max)
    inv_l = 1.0 / jnp.sum(k_exp, keepdims=True)   # exact (no approx recip)

    # y_i = <softmax(k), v_i>; normalization folded into the scalar y.
    y = [jnp.sum((acc[2 + i] + bakv_ref[2 + i]) * k_exp, keepdims=True) * inv_l
         for i in range(ci)]                      # list of (1, 1)

    # m = Wm @ y + bm (tiny -> scalar math), then out = x + m * a.
    for c in range(c_in):
        m_c = wm_ref[c, 0] * y[0]
        for i in range(1, ci):
            m_c = m_c + wm_ref[c, i] * y[i]
        m_c = m_c + bm_ref[c]                     # (1, 1)
        o_ref[0, c] = x_ref[0, c] + m_c * a


# ---------------------------------------------------------------------------
# Whole-S kernel, general C: fused a/k/v projection as one MXU matmul.
# ---------------------------------------------------------------------------
def _ctx_whole_mxu_kernel(x_ref, wakv_ref, bakv_ref, wm_ref, bm_ref, o_ref,
                          *, ci):
    x = x_ref[0]                                                     # (C, S)
    p = jnp.dot(wakv_ref[...], x,
                preferred_element_type=jnp.float32) + bakv_ref[...]  # (Rp, S)
    a = jax.nn.sigmoid(p[0:1, :])                                    # (1, S)
    k_log = p[1:2, :]
    k_max = jnp.max(k_log, axis=-1, keepdims=True)
    k_exp = jnp.exp(k_log - k_max)                                   # (1, S)
    inv_l = 1.0 / jnp.sum(k_exp, axis=-1, keepdims=True)             # exact
    v = p[2:2 + ci, :]                                               # (Ci, S)
    y = jnp.sum(v * k_exp, axis=-1, keepdims=True) * inv_l           # (Ci, 1)
    m = jnp.dot(wm_ref[...], y,
                preferred_element_type=jnp.float32) + bm_ref[...]    # (C, 1)
    o_ref[0] = x + m * a


# ---------------------------------------------------------------------------
# Two-pass S-tiled path (slabs too big to double-buffer in VMEM).
# Pass 1: online softmax + v-weighted accumulation over S tiles -> m vector.
# ---------------------------------------------------------------------------
def _ctx_stats_kernel(x_ref, wakv_ref, bakv_ref, wm_ref, bm_ref, m_ref,
                      msc, lsc, yacc, *, ci, tile_s, s_valid, masked):
    j = pl.program_id(1)

    @pl.when(j == 0)
    def _():
        msc[...] = jnp.full_like(msc, -jnp.inf)
        lsc[...] = jnp.zeros_like(lsc)
        yacc[...] = jnp.zeros_like(yacc)

    x = x_ref[0]                                                     # (C, TS)
    p = jnp.dot(wakv_ref[...], x,
                preferred_element_type=jnp.float32) + bakv_ref[...]  # (Rp, TS)
    k_log = p[1:2, :]                                                # (1, TS)
    v = p[2:2 + ci, :]                                               # (Ci, TS)

    if masked:   # padded tail of S: drop contributions past s_valid
        lane = jax.lax.broadcasted_iota(jnp.int32, (1, tile_s), 1)
        k_log = jnp.where(j * tile_s + lane < s_valid, k_log, -jnp.inf)

    m_new = jnp.maximum(msc[...], jnp.max(k_log, axis=-1, keepdims=True))
    alpha = jnp.exp(msc[...] - m_new)
    w = jnp.exp(k_log - m_new)                                       # (1, TS)
    lsc[...] = alpha * lsc[...] + jnp.sum(w, axis=-1, keepdims=True)
    yacc[...] = alpha * yacc[...] + jnp.sum(v * w, axis=-1, keepdims=True)
    msc[...] = m_new

    @pl.when(j == pl.num_programs(1) - 1)
    def _():
        y = yacc[...] / lsc[...]                                     # exact
        m_ref[0] = jnp.dot(wm_ref[...], y,
                           preferred_element_type=jnp.float32) + bm_ref[...]


# Pass 2: elementwise apply; the sigmoid gate is recomputed per tile (cheap)
# instead of being stored/re-read from HBM.
def _ctx_apply_kernel(x_ref, wa_ref, ba_ref, m_ref, o_ref):
    x = x_ref[0]                                                     # (C, TS)
    a = jax.nn.sigmoid(
        jnp.dot(wa_ref[...], x, preferred_element_type=jnp.float32)
        + ba_ref[...])                                               # (1, TS)
    o_ref[0] = x + m_ref[0] * a


# ---------------------------------------------------------------------------
# pallas_call wrappers.
# ---------------------------------------------------------------------------
def _whole_vpu_call(xf, wakv, bakv_f, wm, bm_f, ci, need, vmem_bytes):
    N, C, Sq, L = xf.shape
    smem = pl.BlockSpec(memory_space=pltpu.MemorySpace.SMEM)
    return pl.pallas_call(
        functools.partial(_ctx_whole_vpu_kernel, c_in=C, ci=ci),
        out_shape=jax.ShapeDtypeStruct((N, C, Sq, L), jnp.float32),
        grid=(N,),
        in_specs=[
            pl.BlockSpec((1, C, Sq, L), lambda n: (n, 0, 0, 0)),     # x folded
            smem, smem, smem, smem,                                  # weights
        ],
        out_specs=pl.BlockSpec((1, C, Sq, L), lambda n: (n, 0, 0, 0)),
        compiler_params=pltpu.CompilerParams(
            dimension_semantics=("parallel",),
            vmem_limit_bytes=_vmem_limit(need, vmem_bytes)),
    )(xf, wakv, bakv_f, wm, bm_f)


def _whole_mxu_call(x, wakv, bakv, wm, bm, ci, need, vmem_bytes):
    N, C, S = x.shape
    Rp = wakv.shape[0]
    return pl.pallas_call(
        functools.partial(_ctx_whole_mxu_kernel, ci=ci),
        out_shape=jax.ShapeDtypeStruct((N, C, S), jnp.float32),
        grid=(N,),
        in_specs=[
            pl.BlockSpec((1, C, S), lambda n: (n, 0, 0)),            # x
            pl.BlockSpec((Rp, C), lambda n: (0, 0)),                 # fused W
            pl.BlockSpec((Rp, 1), lambda n: (0, 0)),                 # fused b
            pl.BlockSpec((C, ci), lambda n: (0, 0)),                 # wm
            pl.BlockSpec((C, 1), lambda n: (0, 0)),                  # bm
        ],
        out_specs=pl.BlockSpec((1, C, S), lambda n: (n, 0, 0)),
        compiler_params=pltpu.CompilerParams(
            dimension_semantics=("parallel",),
            vmem_limit_bytes=_vmem_limit(need, vmem_bytes)),
    )(x, wakv, bakv, wm, bm)


def _tiled_call(x, wakv, bakv, wm, bm, wa, ba, ci, tile_s, s_valid, masked,
                need, vmem_bytes):
    N, C, Sp = x.shape                       # Sp is a multiple of tile_s
    Rp = wakv.shape[0]
    nt = Sp // tile_s
    limit = _vmem_limit(need, vmem_bytes)

    m_vec = pl.pallas_call(
        functools.partial(_ctx_stats_kernel, ci=ci, tile_s=tile_s,
                          s_valid=s_valid, masked=masked),
        out_shape=jax.ShapeDtypeStruct((N, C, 1), jnp.float32),
        grid=(N, nt),
        in_specs=[
            pl.BlockSpec((1, C, tile_s), lambda n, j: (n, 0, j)),
            pl.BlockSpec((Rp, C), lambda n, j: (0, 0)),
            pl.BlockSpec((Rp, 1), lambda n, j: (0, 0)),
            pl.BlockSpec((C, ci), lambda n, j: (0, 0)),
            pl.BlockSpec((C, 1), lambda n, j: (0, 0)),
        ],
        out_specs=pl.BlockSpec((1, C, 1), lambda n, j: (n, 0, 0)),
        scratch_shapes=[
            pltpu.VMEM((1, 1), jnp.float32),     # running softmax max
            pltpu.VMEM((1, 1), jnp.float32),     # running softmax sum
            pltpu.VMEM((ci, 1), jnp.float32),    # running v-weighted sum
        ],
        compiler_params=pltpu.CompilerParams(
            dimension_semantics=("parallel", "arbitrary"),
            vmem_limit_bytes=limit),
    )(x, wakv, bakv, wm, bm)

    return pl.pallas_call(
        _ctx_apply_kernel,
        out_shape=jax.ShapeDtypeStruct((N, C, Sp), jnp.float32),
        grid=(N, nt),
        in_specs=[
            pl.BlockSpec((1, C, tile_s), lambda n, j: (n, 0, j)),
            pl.BlockSpec((1, C), lambda n, j: (0, 0)),               # wa
            pl.BlockSpec((1, 1), lambda n, j: (0, 0)),               # ba
            pl.BlockSpec((1, C, 1), lambda n, j: (n, 0, 0)),         # m
        ],
        out_specs=pl.BlockSpec((1, C, tile_s), lambda n, j: (n, 0, j)),
        compiler_params=pltpu.CompilerParams(
            dimension_semantics=("parallel", "parallel"),
            vmem_limit_bytes=limit),
    )(x, wa, ba, m_vec)


def _pick_tile_s(S, Cp, Rp, weight_bytes, budget):
    """Largest multiple-of-128 tile that fits the budget; prefer a big exact
    divisor of S so no tail padding/masking is needed."""
    per_lane = 4 * max(2 * Cp + 2 * Rp + 4,      # stats pass footprint / lane
                       4 * Cp + 4)               # apply pass footprint / lane
    fixed = 2 * weight_bytes + (1 << 20)
    max_tile = max(128, ((budget - fixed) // per_lane) // 128 * 128)
    max_tile = int(min(max_tile, _round_up(S, 128), 64 * 1024))
    t = max_tile
    while t >= 128:
        if S % t == 0:
            break
        t -= 128
    best_div = t if (t >= 128 and S % t == 0) else 0
    if best_div >= max(2048, max_tile // 2):
        return best_div
    return max_tile


def context_aggregation(x_nchw, params, *, vmem_budget_bytes=None,
                        force_tile_s=None, force_mxu=False):
    """ContextAggregation forward. x_nchw: (N, C, H, W) f32. params: 1x1 convs."""
    N, C, H, W = x_nchw.shape
    S = H * W
    Ci = params["wv"].shape[0]
    x = x_nchw.reshape(N, C, S).astype(jnp.float32)

    vmem_bytes = _tpu_vmem_bytes()
    if vmem_budget_bytes is None:
        # ~96 MiB usable on 128-MiB-VMEM chips (v5e/v6e), ~48 MiB on v7x.
        vmem_budget_bytes = (vmem_bytes * 3) // 4
    # Heuristic: 64-MiB-VMEM parts (v7x) carry two TensorCores per chip.
    num_tc = 2 if vmem_bytes <= (64 << 20) else 1

    # Fused a/k/v projection operand: rows [wa; wk; wv; 0-pad], Rp % 8 == 0.
    rows = 2 + Ci
    Rp = _round_up(max(rows, 8), 8)
    wakv = jnp.zeros((Rp, C), jnp.float32)
    wakv = wakv.at[0:1].set(params["wa"].astype(jnp.float32))
    wakv = wakv.at[1:2].set(params["wk"].astype(jnp.float32))
    wakv = wakv.at[2:2 + Ci].set(params["wv"].astype(jnp.float32))
    bakv = jnp.zeros((Rp, 1), jnp.float32)
    bakv = bakv.at[0:1].set(params["ba"].astype(jnp.float32))
    bakv = bakv.at[1:2].set(params["bk"].astype(jnp.float32))
    bakv = bakv.at[2:2 + Ci].set(params["bv"].astype(jnp.float32))
    wm = params["wm"].astype(jnp.float32)
    bm = params["bm"].astype(jnp.float32)
    wa = params["wa"].astype(jnp.float32).reshape(1, C)
    ba = params["ba"].astype(jnp.float32).reshape(1, 1)

    weight_bytes = 4 * (wakv.size + bakv.size + wm.size + bm.size)
    Cp = _round_up(C, 8)                         # sublane-padded channel count

    # Per-path VMEM footprints (double-buffered blocks + intermediates).
    small_c = (C <= 8) and (Ci <= 8) and (S % 128 == 0) and not force_mxu
    if small_c:      # folded layout is sublane-dense; temps = acc rows + gate + k_exp
        whole_need = 4 * S * (4 * C + (2 + Ci) + 3) + (1 << 20)
    else:            # x/out blocks (sublane-padded, dbuf) + (Rp,S) p + temps
        whole_need = 4 * S * (4 * Cp + 2 * Rp + 4) + 2 * weight_bytes + (1 << 20)

    def tiled_need(ts):
        stats = 4 * ts * (2 * Cp + 2 * Rp + 4)
        apply = 4 * ts * (4 * Cp + 4)
        return max(stats, apply) + 2 * weight_bytes + (1 << 20)

    # Path selection: never take the whole-S path when it exceeds the budget.
    use_tiled = (force_tile_s is not None) or (whole_need > vmem_budget_bytes)
    # On a 2-TensorCore part, a single-batch whole-S call keeps one core idle;
    # prefer the S-tiled path (its apply pass is parallel over S).
    if (not use_tiled and force_tile_s is None and N == 1 and num_tc >= 2
            and S >= (1 << 15)):
        use_tiled = True

    if not use_tiled:
        if small_c:
            xf = x.reshape(N, C, S // 128, 128)      # free reshape (metadata)
            out = _whole_vpu_call(xf, wakv, bakv.reshape(Rp), wm,
                                  bm.reshape(C), Ci, whole_need, vmem_bytes)
            return out.reshape(N, C, H, W)
        out = _whole_mxu_call(x, wakv, bakv, wm, bm, Ci, whole_need, vmem_bytes)
        return out.reshape(N, C, H, W)

    # S-tiled two-pass path.
    if force_tile_s is not None:
        assert force_tile_s % 128 == 0, "tile_s must be a multiple of 128"
        tile_s = int(min(force_tile_s, _round_up(S, 128)))
    else:
        tile_s = _pick_tile_s(S, Cp, Rp, weight_bytes, vmem_budget_bytes)
    Sp = _round_up(S, tile_s)
    masked = Sp != S
    x_t = x if not masked else jnp.pad(x, ((0, 0), (0, 0), (0, Sp - S)))
    out = _tiled_call(x_t, wakv, bakv, wm, bm, wa, ba, Ci, tile_s, S, masked,
                      tiled_need(tile_s), vmem_bytes)
    if masked:
        out = out[:, :, :S]
    return out.reshape(N, C, H, W)


# ---------------------------------------------------------------------------
# Pure-JAX reference mirroring the PyTorch forward (NCHW).
# ---------------------------------------------------------------------------
def _reference(x_nchw, params):
    N, C, H, W = x_nchw.shape
    S = H * W
    x = x_nchw.reshape(N, C, S).astype(jnp.float32)
    hp = jax.lax.Precision.HIGHEST
    a = jax.nn.sigmoid(jnp.einsum("oc,ncs->nos", params["wa"], x,
                                  precision=hp) + params["ba"][None])
    k = jnp.einsum("oc,ncs->nos", params["wk"], x, precision=hp) + params["bk"][None]
    k = jax.nn.softmax(k, axis=-1)                           # softmax over H*W
    v = jnp.einsum("oc,ncs->nos", params["wv"], x, precision=hp) + params["bv"][None]
    y = jnp.einsum("ncs,nos->nc", v, k, precision=hp)        # (N, Ci)
    m = jnp.einsum("co,no->nc", params["wm"], y, precision=hp) + params["bm"][:, 0][None]
    out = x + m[:, :, None] * a
    return out.reshape(N, C, H, W)


if __name__ == "__main__":
    # Module config: in_channels=4, reduction=1 -> inter_channels=4.
    N, C, H, W = 2, 4, 16, 16
    Ci = max(C // 1, 1)

    key = jax.random.PRNGKey(0)
    ks = jax.random.split(key, 9)
    # NOTE: the real init zeros conv `m` (block becomes identity); random
    # values keep the computation non-trivial.
    params = dict(
        wa=jax.random.normal(ks[0], (1, C), jnp.float32) * 0.5,
        ba=jax.random.normal(ks[1], (1, 1), jnp.float32) * 0.1,
        wk=jax.random.normal(ks[2], (1, C), jnp.float32) * 0.5,
        bk=jax.random.normal(ks[3], (1, 1), jnp.float32) * 0.1,
        wv=jax.random.normal(ks[4], (Ci, C), jnp.float32) * 0.5,
        bv=jax.random.normal(ks[5], (Ci, 1), jnp.float32) * 0.1,
        wm=jax.random.normal(ks[6], (C, Ci), jnp.float32) * 0.5,
        bm=jax.random.normal(ks[7], (C, 1), jnp.float32) * 0.1,
    )
    x = jax.random.normal(ks[8], (N, C, H, W), jnp.float32)
    ref = _reference(x, params)

    def check(out, ref_out, tag):
        assert out.shape == ref_out.shape, tag
        assert jnp.allclose(out, ref_out, atol=1e-4, rtol=1e-4), tag

    # 1) Default: small-C folded-layout VPU whole-S path.
    out = jax.block_until_ready(context_aggregation(x, params))
    check(out, ref, "vpu whole-S mismatch")

    # 2) Fused-MXU whole-S path (the production-size-C variant).
    out = jax.block_until_ready(context_aggregation(x, params, force_mxu=True))
    check(out, ref, "mxu whole-S mismatch")

    # 3) Two-pass S-tiled path (taken when the slab exceeds the VMEM budget).
    out = jax.block_until_ready(context_aggregation(x, params, force_tile_s=128))
    check(out, ref, "tiled mismatch")

    # 4) Awkward S (not a multiple of 128): full-block whole-S path ...
    x2 = jax.random.normal(ks[8], (1, C, 10, 10), jnp.float32)
    ref2 = _reference(x2, params)
    out2 = jax.block_until_ready(context_aggregation(x2, params))
    check(out2, ref2, "whole-S (S % 128 != 0) mismatch")

    # 5) ... and the padded / masked-tail tiled fallback on the same shape.
    out2 = jax.block_until_ready(context_aggregation(x2, params, force_tile_s=128))
    check(out2, ref2, "masked-tail tiled mismatch")

    print("KERNEL_OK")
</pallas_src>

<mosaic_0001>
module attributes {stable_mosaic.version = 11 : i64} {
  func.func @_ctx_whole_vpu_kernel(%arg0: i32, %arg1: memref<1x4x2x128xf32, #tpu.memory_space<vmem>>, %arg2: memref<8x4xf32, #tpu.memory_space<smem>>, %arg3: memref<8xf32, #tpu.memory_space<smem>>, %arg4: memref<4x4xf32, #tpu.memory_space<smem>>, %arg5: memref<4xf32, #tpu.memory_space<smem>>, %arg6: memref<1x4x2x128xf32, #tpu.memory_space<vmem>>) attributes {dimension_semantics = [#tpu.dimension_semantics<parallel>], iteration_bounds = array<i64: 2>, scalar_prefetch = 0 : i64, scratch_operands = 0 : i64, tpu.core_type = #tpu.core_type<tc>, window_params = [{transform_indices = @transform_0, window_bounds = array<i64: 1, 4, 2, 128>}, {transform_indices = @transform_1, window_bounds = array<i64: 8, 4>}, {transform_indices = @transform_2, window_bounds = array<i64: 8>}, {transform_indices = @transform_3, window_bounds = array<i64: 4, 4>}, {transform_indices = @transform_4, window_bounds = array<i64: 4>}, {transform_indices = @transform_5, window_bounds = array<i64: 1, 4, 2, 128>}]} {
    %c0 = arith.constant 0 : index
    %c0_0 = arith.constant 0 : index
    %c0_1 = arith.constant 0 : index
    %c0_2 = arith.constant 0 : index
    %0 = vector.load %arg1[%c0, %c0_0, %c0_1, %c0_2] : memref<1x4x2x128xf32, #tpu.memory_space<vmem>>, vector<1x1x2x128xf32>
    %1 = vector.shape_cast %0 : vector<1x1x2x128xf32> to vector<2x128xf32>
    %c0_3 = arith.constant 0 : index
    %c0_4 = arith.constant 0 : index
    %2 = memref.load %arg2[%c0_3, %c0_4] : memref<8x4xf32, #tpu.memory_space<smem>>
    %3 = vector.broadcast %2 : f32 to vector<2x128xf32>
    %4 = arith.mulf %3, %1 : vector<2x128xf32>
    %c1 = arith.constant 1 : index
    %c0_5 = arith.constant 0 : index
    %5 = memref.load %arg2[%c1, %c0_5] : memref<8x4xf32, #tpu.memory_space<smem>>
    %6 = vector.broadcast %5 : f32 to vector<2x128xf32>
    %7 = arith.mulf %6, %1 : vector<2x128xf32>
    %c2 = arith.constant 2 : index
    %c0_6 = arith.constant 0 : index
    %8 = memref.load %arg2[%c2, %c0_6] : memref<8x4xf32, #tpu.memory_space<smem>>
    %9 = vector.broadcast %8 : f32 to vector<2x128xf32>
    %10 = arith.mulf %9, %1 : vector<2x128xf32>
    %c3 = arith.constant 3 : index
    %c0_7 = arith.constant 0 : index
    %11 = memref.load %arg2[%c3, %c0_7] : memref<8x4xf32, #tpu.memory_space<smem>>
    %12 = vector.broadcast %11 : f32 to vector<2x128xf32>
    %13 = arith.mulf %12, %1 : vector<2x128xf32>
    %c4 = arith.constant 4 : index
    %c0_8 = arith.constant 0 : index
    %14 = memref.load %arg2[%c4, %c0_8] : memref<8x4xf32, #tpu.memory_space<smem>>
    %15 = vector.broadcast %14 : f32 to vector<2x128xf32>
    %16 = arith.mulf %15, %1 : vector<2x128xf32>
    %c5 = arith.constant 5 : index
    %c0_9 = arith.constant 0 : index
    %17 = memref.load %arg2[%c5, %c0_9] : memref<8x4xf32, #tpu.memory_space<smem>>
    %18 = vector.broadcast %17 : f32 to vector<2x128xf32>
    %19 = arith.mulf %18, %1 : vector<2x128xf32>
    %c0_10 = arith.constant 0 : index
    %c1_11 = arith.constant 1 : index
    %c0_12 = arith.constant 0 : index
    %c0_13 = arith.constant 0 : index
    %20 = vector.load %arg1[%c0_10, %c1_11, %c0_12, %c0_13] : memref<1x4x2x128xf32, #tpu.memory_space<vmem>>, vector<1x1x2x128xf32>
    %21 = vector.shape_cast %20 : vector<1x1x2x128xf32> to vector<2x128xf32>
    %c0_14 = arith.constant 0 : index
    %c1_15 = arith.constant 1 : index
    %22 = memref.load %arg2[%c0_14, %c1_15] : memref<8x4xf32, #tpu.memory_space<smem>>
    %23 = vector.broadcast %22 : f32 to vector<2x128xf32>
    %24 = arith.mulf %23, %21 : vector<2x128xf32>
    %25 = arith.addf %4, %24 : vector<2x128xf32>
    %c1_16 = arith.constant 1 : index
    %c1_17 = arith.constant 1 : index
    %26 = memref.load %arg2[%c1_16, %c1_17] : memref<8x4xf32, #tpu.memory_space<smem>>
    %27 = vector.broadcast %26 : f32 to vector<2x128xf32>
    %28 = arith.mulf %27, %21 : vector<2x128xf32>
    %29 = arith.addf %7, %28 : vector<2x128xf32>
    %c2_18 = arith.constant 2 : index
    %c1_19 = arith.constant 1 : index
    %30 = memref.load %arg2[%c2_18, %c1_19] : memref<8x4xf32, #tpu.memory_space<smem>>
    %31 = vector.broadcast %30 : f32 to vector<2x128xf32>
    %32 = arith.mulf %31, %21 : vector<2x128xf32>
    %33 = arith.addf %10, %32 : vector<2x128xf32>
    %c3_20 = arith.constant 3 : index
    %c1_21 = arith.constant 1 : index
    %34 = memref.load %arg2[%c3_20, %c1_21] : memref<8x4xf32, #tpu.memory_space<smem>>
    %35 = vector.broadcast %34 : f32 to vector<2x128xf32>
    %36 = arith.mulf %35, %21 : vector<2x128xf32>
    %37 = arith.addf %13, %36 : vector<2x128xf32>
    %c4_22 = arith.constant 4 : index
    %c1_23 = arith.constant 1 : index
    %38 = memref.load %arg2[%c4_22, %c1_23] : memref<8x4xf32, #tpu.memory_space<smem>>
    %39 = vector.broadcast %38 : f32 to vector<2x128xf32>
    %40 = arith.mulf %39, %21 : vector<2x128xf32>
    %41 = arith.addf %16, %40 : vector<2x128xf32>
    %c5_24 = arith.constant 5 : index
    %c1_25 = arith.constant 1 : index
    %42 = memref.load %arg2[%c5_24, %c1_25] : memref<8x4xf32, #tpu.memory_space<smem>>
    %43 = vector.broadcast %42 : f32 to vector<2x128xf32>
    %44 = arith.mulf %43, %21 : vector<2x128xf32>
    %45 = arith.addf %19, %44 : vector<2x128xf32>
    %c0_26 = arith.constant 0 : index
    %c2_27 = arith.constant 2 : index
    %c0_28 = arith.constant 0 : index
    %c0_29 = arith.constant 0 : index
    %46 = vector.load %arg1[%c0_26, %c2_27, %c0_28, %c0_29] : memref<1x4x2x128xf32, #tpu.memory_space<vmem>>, vector<1x1x2x128xf32>
    %47 = vector.shape_cast %46 : vector<1x1x2x128xf32> to vector<2x128xf32>
    %c0_30 = arith.constant 0 : index
    %c2_31 = arith.constant 2 : index
    %48 = memref.load %arg2[%c0_30, %c2_31] : memref<8x4xf32, #tpu.memory_space<smem>>
    %49 = vector.broadcast %48 : f32 to vector<2x128xf32>
    %50 = arith.mulf %49, %47 : vector<2x128xf32>
    %51 = arith.addf %25, %50 : vector<2x128xf32>
    %c1_32 = arith.constant 1 : index
    %c2_33 = arith.constant 2 : index
    %52 = memref.load %arg2[%c1_32, %c2_33] : memref<8x4xf32, #tpu.memory_space<smem>>
    %53 = vector.broadcast %52 : f32 to vector<2x128xf32>
    %54 = arith.mulf %53, %47 : vector<2x128xf32>
    %55 = arith.addf %29, %54 : vector<2x128xf32>
    %c2_34 = arith.constant 2 : index
    %c2_35 = arith.constant 2 : index
    %56 = memref.load %arg2[%c2_34, %c2_35] : memref<8x4xf32, #tpu.memory_space<smem>>
    %57 = vector.broadcast %56 : f32 to vector<2x128xf32>
    %58 = arith.mulf %57, %47 : vector<2x128xf32>
    %59 = arith.addf %33, %58 : vector<2x128xf32>
    %c3_36 = arith.constant 3 : index
    %c2_37 = arith.constant 2 : index
    %60 = memref.load %arg2[%c3_36, %c2_37] : memref<8x4xf32, #tpu.memory_space<smem>>
    %61 = vector.broadcast %60 : f32 to vector<2x128xf32>
    %62 = arith.mulf %61, %47 : vector<2x128xf32>
    %63 = arith.addf %37, %62 : vector<2x128xf32>
    %c4_38 = arith.constant 4 : index
    %c2_39 = arith.constant 2 : index
    %64 = memref.load %arg2[%c4_38, %c2_39] : memref<8x4xf32, #tpu.memory_space<smem>>
    %65 = vector.broadcast %64 : f32 to vector<2x128xf32>
    %66 = arith.mulf %65, %47 : vector<2x128xf32>
    %67 = arith.addf %41, %66 : vector<2x128xf32>
    %c5_40 = arith.constant 5 : index
    %c2_41 = arith.constant 2 : index
    %68 = memref.load %arg2[%c5_40, %c2_41] : memref<8x4xf32, #tpu.memory_space<smem>>
    %69 = vector.broadcast %68 : f32 to vector<2x128xf32>
    %70 = arith.mulf %69, %47 : vector<2x128xf32>
    %71 = arith.addf %45, %70 : vector<2x128xf32>
    %c0_42 = arith.constant 0 : index
    %c3_43 = arith.constant 3 : index
    %c0_44 = arith.constant 0 : index
    %c0_45 = arith.constant 0 : index
    %72 = vector.load %arg1[%c0_42, %c3_43, %c0_44, %c0_45] : memref<1x4x2x128xf32, #tpu.memory_space<vmem>>, vector<1x1x2x128xf32>
    %73 = vector.shape_cast %72 : vector<1x1x2x128xf32> to vector<2x128xf32>
    %c0_46 = arith.constant 0 : index
    %c3_47 = arith.constant 3 : index
    %74 = memref.load %arg2[%c0_46, %c3_47] : memref<8x4xf32, #tpu.memory_space<smem>>
    %75 = vector.broadcast %74 : f32 to vector<2x128xf32>
    %76 = arith.mulf %75, %73 : vector<2x128xf32>
    %77 = arith.addf %51, %76 : vector<2x128xf32>
    %c1_48 = arith.constant 1 : index
    %c3_49 = arith.constant 3 : index
    %78 = memref.load %arg2[%c1_48, %c3_49] : memref<8x4xf32, #tpu.memory_space<smem>>
    %79 = vector.broadcast %78 : f32 to vector<2x128xf32>
    %80 = arith.mulf %79, %73 : vector<2x128xf32>
    %81 = arith.addf %55, %80 : vector<2x128xf32>
    %c2_50 = arith.constant 2 : index
    %c3_51 = arith.constant 3 : index
    %82 = memref.load %arg2[%c2_50, %c3_51] : memref<8x4xf32, #tpu.memory_space<smem>>
    %83 = vector.broadcast %82 : f32 to vector<2x128xf32>
    %84 = arith.mulf %83, %73 : vector<2x128xf32>
    %85 = arith.addf %59, %84 : vector<2x128xf32>
    %c3_52 = arith.constant 3 : index
    %c3_53 = arith.constant 3 : index
    %86 = memref.load %arg2[%c3_52, %c3_53] : memref<8x4xf32, #tpu.memory_space<smem>>
    %87 = vector.broadcast %86 : f32 to vector<2x128xf32>
    %88 = arith.mulf %87, %73 : vector<2x128xf32>
    %89 = arith.addf %63, %88 : vector<2x128xf32>
    %c4_54 = arith.constant 4 : index
    %c3_55 = arith.constant 3 : index
    %90 = memref.load %arg2[%c4_54, %c3_55] : memref<8x4xf32, #tpu.memory_space<smem>>
    %91 = vector.broadcast %90 : f32 to vector<2x128xf32>
    %92 = arith.mulf %91, %73 : vector<2x128xf32>
    %93 = arith.addf %67, %92 : vector<2x128xf32>
    %c5_56 = arith.constant 5 : index
    %c3_57 = arith.constant 3 : index
    %94 = memref.load %arg2[%c5_56, %c3_57] : memref<8x4xf32, #tpu.memory_space<smem>>
    %95 = vector.broadcast %94 : f32 to vector<2x128xf32>
    %96 = arith.mulf %95, %73 : vector<2x128xf32>
    %97 = arith.addf %71, %96 : vector<2x128xf32>
    %c0_58 = arith.constant 0 : index
    %98 = memref.load %arg3[%c0_58] : memref<8xf32, #tpu.memory_space<smem>>
    %99 = vector.broadcast %98 : f32 to vector<2x128xf32>
    %100 = arith.addf %77, %99 : vector<2x128xf32>
    %101 = arith.negf %100 : vector<2x128xf32>
    %102 = math.exp %101 : vector<2x128xf32>
    %cst = arith.constant 1.000000e+00 : f32
    %103 = vector.broadcast %cst : f32 to vector<2x128xf32>
    %104 = arith.addf %103, %102 : vector<2x128xf32>
    %105 = arith.divf %103, %104 : vector<2x128xf32>
    %c1_59 = arith.constant 1 : index
    %106 = memref.load %arg3[%c1_59] : memref<8xf32, #tpu.memory_space<smem>>
    %107 = vector.broadcast %106 : f32 to vector<2x128xf32>
    %108 = arith.addf %81, %107 : vector<2x128xf32>
    %109 = vector.shape_cast %108 : vector<2x128xf32> to vector<1x2x128xf32>
    %cst_60 = arith.constant dense<0xFF800000> : vector<1xf32>
    %110 = vector.multi_reduction <maximumf>, %109, %cst_60 [1, 2] : vector<1x2x128xf32> to vector<1xf32>
    %111 = vector.shape_cast %110 : vector<1xf32> to vector<1x1x1xf32>
    %112 = vector.extract %111[0, 0, 0] : f32 from vector<1x1x1xf32>
    %113 = vector.broadcast %112 : f32 to vector<1x1xf32>
    %114 = vector.broadcast %113 : vector<1x1xf32> to vector<2x128xf32>
    %115 = arith.subf %108, %114 : vector<2x128xf32>
    %116 = math.exp %115 : vector<2x128xf32>
    %117 = vector.shape_cast %116 : vector<2x128xf32> to vector<1x2x128xf32>
    %cst_61 = arith.constant dense<0.000000e+00> : vector<1xf32>
    %118 = vector.multi_reduction <add>, %117, %cst_61 [1, 2] : vector<1x2x128xf32> to vector<1xf32>
    %119 = vector.shape_cast %118 : vector<1xf32> to vector<1x1x1xf32>
    %120 = vector.extract %119[0, 0, 0] : f32 from vector<1x1x1xf32>
    %121 = vector.broadcast %120 : f32 to vector<1x1xf32>
    %cst_62 = arith.constant 1.000000e+00 : f32
    %122 = vector.broadcast %cst_62 : f32 to vector<1x1xf32>
    %123 = arith.divf %122, %121 : vector<1x1xf32>
    %c2_63 = arith.constant 2 : index
    %124 = memref.load %arg3[%c2_63] : memref<8xf32, #tpu.memory_space<smem>>
    %125 = vector.broadcast %124 : f32 to vector<2x128xf32>
    %126 = arith.addf %85, %125 : vector<2x128xf32>
    %127 = arith.mulf %126, %116 : vector<2x128xf32>
    %128 = vector.shape_cast %127 : vector<2x128xf32> to vector<1x2x128xf32>
    %cst_64 = arith.constant dense<0.000000e+00> : vector<1xf32>
    %129 = vector.multi_reduction <add>, %128, %cst_64 [1, 2] : vector<1x2x128xf32> to vector<1xf32>
    %130 = vector.shape_cast %129 : vector<1xf32> to vector<1x1x1xf32>
    %131 = vector.extract %130[0, 0, 0] : f32 from vector<1x1x1xf32>
    %132 = vector.broadcast %131 : f32 to vector<1x1xf32>
    %133 = arith.mulf %132, %123 : vector<1x1xf32>
    %c3_65 = arith.constant 3 : index
    %134 = memref.load %arg3[%c3_65] : memref<8xf32, #tpu.memory_space<smem>>
    %135 = vector.broadcast %134 : f32 to vector<2x128xf32>
    %136 = arith.addf %89, %135 : vector<2x128xf32>
    %137 = arith.mulf %136, %116 : vector<2x128xf32>
    %138 = vector.shape_cast %137 : vector<2x128xf32> to vector<1x2x128xf32>
    %cst_66 = arith.constant dense<0.000000e+00> : vector<1xf32>
    %139 = vector.multi_reduction <add>, %138, %cst_66 [1, 2] : vector<1x2x128xf32> to vector<1xf32>
    %140 = vector.shape_cast %139 : vector<1xf32> to vector<1x1x1xf32>
    %141 = vector.extract %140[0, 0, 0] : f32 from vector<1x1x1xf32>
    %142 = vector.broadcast %141 : f32 to vector<1x1xf32>
    %143 = arith.mulf %142, %123 : vector<1x1xf32>
    %c4_67 = arith.constant 4 : index
    %144 = memref.load %arg3[%c4_67] : memref<8xf32, #tpu.memory_space<smem>>
    %145 = vector.broadcast %144 : f32 to vector<2x128xf32>
    %146 = arith.addf %93, %145 : vector<2x128xf32>
    %147 = arith.mulf %146, %116 : vector<2x128xf32>
    %148 = vector.shape_cast %147 : vector<2x128xf32> to vector<1x2x128xf32>
    %cst_68 = arith.constant dense<0.000000e+00> : vector<1xf32>
    %149 = vector.multi_reduction <add>, %148, %cst_68 [1, 2] : vector<1x2x128xf32> to vector<1xf32>
    %150 = vector.shape_cast %149 : vector<1xf32> to vector<1x1x1xf32>
    %151 = vector.extract %150[0, 0, 0] : f32 from vector<1x1x1xf32>
    %152 = vector.broadcast %151 : f32 to vector<1x1xf32>
    %153 = arith.mulf %152, %123 : vector<1x1xf32>
    %c5_69 = arith.constant 5 : index
    %154 = memref.load %arg3[%c5_69] : memref<8xf32, #tpu.memory_space<smem>>
    %155 = vector.broadcast %154 : f32 to vector<2x128xf32>
    %156 = arith.addf %97, %155 : vector<2x128xf32>
    %157 = arith.mulf %156, %116 : vector<2x128xf32>
    %158 = vector.shape_cast %157 : vector<2x128xf32> to vector<1x2x128xf32>
    %cst_70 = arith.constant dense<0.000000e+00> : vector<1xf32>
    %159 = vector.multi_reduction <add>, %158, %cst_70 [1, 2] : vector<1x2x128xf32> to vector<1xf32>
    %160 = vector.shape_cast %159 : vector<1xf32> to vector<1x1x1xf32>
    %161 = vector.extract %160[0, 0, 0] : f32 from vector<1x1x1xf32>
    %162 = vector.broadcast %161 : f32 to vector<1x1xf32>
    %163 = arith.mulf %162, %123 : vector<1x1xf32>
    %c0_71 = arith.constant 0 : index
    %c0_72 = arith.constant 0 : index
    %164 = memref.load %arg4[%c0_71, %c0_72] : memref<4x4xf32, #tpu.memory_space<smem>>
    %165 = vector.broadcast %164 : f32 to vector<1x1xf32>
    %166 = arith.mulf %165, %133 : vector<1x1xf32>
    %c0_73 = arith.constant 0 : index
    %c1_74 = arith.constant 1 : index
    %167 = memref.load %arg4[%c0_73, %c1_74] : memref<4x4xf32, #tpu.memory_space<smem>>
    %168 = vector.broadcast %167 : f32 to vector<1x1xf32>
    %169 = arith.mulf %168, %143 : vector<1x1xf32>
    %170 = arith.addf %166, %169 : vector<1x1xf32>
    %c0_75 = arith.constant 0 : index
    %c2_76 = arith.constant 2 : index
    %171 = memref.load %arg4[%c0_75, %c2_76] : memref<4x4xf32, #tpu.memory_space<smem>>
    %172 = vector.broadcast %171 : f32 to vector<1x1xf32>
    %173 = arith.mulf %172, %153 : vector<1x1xf32>
    %174 = arith.addf %170, %173 : vector<1x1xf32>
    %c0_77 = arith.constant 0 : index
    %c3_78 = arith.constant 3 : index
    %175 = memref.load %arg4[%c0_77, %c3_78] : memref<4x4xf32, #tpu.memory_space<smem>>
    %176 = vector.broadcast %175 : f32 to vector<1x1xf32>
    %177 = arith.mulf %176, %163 : vector<1x1xf32>
    %178 = arith.addf %174, %177 : vector<1x1xf32>
    %c0_79 = arith.constant 0 : index
    %179 = memref.load %arg5[%c0_79] : memref<4xf32, #tpu.memory_space<smem>>
    %180 = vector.broadcast %179 : f32 to vector<1x1xf32>
    %181 = arith.addf %178, %180 : vector<1x1xf32>
    %c0_80 = arith.constant 0 : index
    %c0_81 = arith.constant 0 : index
    %c0_82 = arith.constant 0 : index
    %c0_83 = arith.constant 0 : index
    %182 = vector.load %arg1[%c0_80, %c0_81, %c0_82, %c0_83] : memref<1x4x2x128xf32, #tpu.memory_space<vmem>>, vector<1x1x2x128xf32>
    %183 = vector.shape_cast %182 : vector<1x1x2x128xf32> to vector<2x128xf32>
    %184 = vector.broadcast %181 : vector<1x1xf32> to vector<2x128xf32>
    %185 = arith.mulf %184, %105 : vector<2x128xf32>
    %186 = arith.addf %183, %185 : vector<2x128xf32>
    %c0_84 = arith.constant 0 : index
    %c0_85 = arith.constant 0 : index
    %c0_86 = arith.constant 0 : index
    %c0_87 = arith.constant 0 : index
    %187 = vector.load %arg6[%c0_84, %c0_85, %c0_86, %c0_87] : memref<1x4x2x128xf32, #tpu.memory_space<vmem>>, vector<1x1x2x128xf32>
    %188 = vector.shape_cast %187 : vector<1x1x2x128xf32> to vector<2x128xf32>
    %189 = vector.shape_cast %186 : vector<2x128xf32> to vector<1x1x2x128xf32>
    tpu.vector_store %arg6[%c0_84, %c0_85, %c0_86, %c0_87], %189 {strides = array<i32>} : memref<1x4x2x128xf32, #tpu.memory_space<vmem>>, vector<1x1x2x128xf32>,
    %c1_88 = arith.constant 1 : index
    %c0_89 = arith.constant 0 : index
    %190 = memref.load %arg4[%c1_88, %c0_89] : memref<4x4xf32, #tpu.memory_space<smem>>
    %191 = vector.broadcast %190 : f32 to vector<1x1xf32>
    %192 = arith.mulf %191, %133 : vector<1x1xf32>
    %c1_90 = arith.constant 1 : index
    %c1_91 = arith.constant 1 : index
    %193 = memref.load %arg4[%c1_90, %c1_91] : memref<4x4xf32, #tpu.memory_space<smem>>
    %194 = vector.broadcast %193 : f32 to vector<1x1xf32>
    %195 = arith.mulf %194, %143 : vector<1x1xf32>
    %196 = arith.addf %192, %195 : vector<1x1xf32>
    %c1_92 = arith.constant 1 : index
    %c2_93 = arith.constant 2 : index
    %197 = memref.load %arg4[%c1_92, %c2_93] : memref<4x4xf32, #tpu.memory_space<smem>>
    %198 = vector.broadcast %197 : f32 to vector<1x1xf32>
    %199 = arith.mulf %198, %153 : vector<1x1xf32>
    %200 = arith.addf %196, %199 : vector<1x1xf32>
    %c1_94 = arith.constant 1 : index
    %c3_95 = arith.constant 3 : index
    %201 = memref.load %arg4[%c1_94, %c3_95] : memref<4x4xf32, #tpu.memory_space<smem>>
    %202 = vector.broadcast %201 : f32 to vector<1x1xf32>
    %203 = arith.mulf %202, %163 : vector<1x1xf32>
    %204 = arith.addf %200, %203 : vector<1x1xf32>
    %c1_96 = arith.constant 1 : index
    %205 = memref.load %arg5[%c1_96] : memref<4xf32, #tpu.memory_space<smem>>
    %206 = vector.broadcast %205 : f32 to vector<1x1xf32>
    %207 = arith.addf %204, %206 : vector<1x1xf32>
    %c0_97 = arith.constant 0 : index
    %c1_98 = arith.constant 1 : index
    %c0_99 = arith.constant 0 : index
    %c0_100 = arith.constant 0 : index
    %208 = vector.load %arg1[%c0_97, %c1_98, %c0_99, %c0_100] : memref<1x4x2x128xf32, #tpu.memory_space<vmem>>, vector<1x1x2x128xf32>
    %209 = vector.shape_cast %208 : vector<1x1x2x128xf32> to vector<2x128xf32>
    %210 = vector.broadcast %207 : vector<1x1xf32> to vector<2x128xf32>
    %211 = arith.mulf %210, %105 : vector<2x128xf32>
    %212 = arith.addf %209, %211 : vector<2x128xf32>
    %c0_101 = arith.constant 0 : index
    %c1_102 = arith.constant 1 : index
    %c0_103 = arith.constant 0 : index
    %c0_104 = arith.constant 0 : index
    %213 = vector.load %arg6[%c0_101, %c1_102, %c0_103, %c0_104] : memref<1x4x2x128xf32, #tpu.memory_space<vmem>>, vector<1x1x2x128xf32>
    %214 = vector.shape_cast %213 : vector<1x1x2x128xf32> to vector<2x128xf32>
    %215 = vector.shape_cast %212 : vector<2x128xf32> to vector<1x1x2x128xf32>
    tpu.vector_store %arg6[%c0_101, %c1_102, %c0_103, %c0_104], %215 {strides = array<i32>} : memref<1x4x2x128xf32, #tpu.memory_space<vmem>>, vector<1x1x2x128xf32>,
    %c2_105 = arith.constant 2 : index
    %c0_106 = arith.constant 0 : index
    %216 = memref.load %arg4[%c2_105, %c0_106] : memref<4x4xf32, #tpu.memory_space<smem>>
    %217 = vector.broadcast %216 : f32 to vector<1x1xf32>
    %218 = arith.mulf %217, %133 : vector<1x1xf32>
    %c2_107 = arith.constant 2 : index
    %c1_108 = arith.constant 1 : index
    %219 = memref.load %arg4[%c2_107, %c1_108] : memref<4x4xf32, #tpu.memory_space<smem>>
    %220 = vector.broadcast %219 : f32 to vector<1x1xf32>
    %221 = arith.mulf %220, %143 : vector<1x1xf32>
    %222 = arith.addf %218, %221 : vector<1x1xf32>
    %c2_109 = arith.constant 2 : index
    %c2_110 = arith.constant 2 : index
    %223 = memref.load %arg4[%c2_109, %c2_110] : memref<4x4xf32, #tpu.memory_space<smem>>
    %224 = vector.broadcast %223 : f32 to vector<1x1xf32>
    %225 = arith.mulf %224, %153 : vector<1x1xf32>
    %226 = arith.addf %222, %225 : vector<1x1xf32>
    %c2_111 = arith.constant 2 : index
    %c3_112 = arith.constant 3 : index
    %227 = memref.load %arg4[%c2_111, %c3_112] : memref<4x4xf32, #tpu.memory_space<smem>>
    %228 = vector.broadcast %227 : f32 to vector<1x1xf32>
    %229 = arith.mulf %228, %163 : vector<1x1xf32>
    %230 = arith.addf %226, %229 : vector<1x1xf32>
    %c2_113 = arith.constant 2 : index
    %231 = memref.load %arg5[%c2_113] : memref<4xf32, #tpu.memory_space<smem>>
    %232 = vector.broadcast %231 : f32 to vector<1x1xf32>
    %233 = arith.addf %230, %232 : vector<1x1xf32>
    %c0_114 = arith.constant 0 : index
    %c2_115 = arith.constant 2 : index
    %c0_116 = arith.constant 0 : index
    %c0_117 = arith.constant 0 : index
    %234 = vector.load %arg1[%c0_114, %c2_115, %c0_116, %c0_117] : memref<1x4x2x128xf32, #tpu.memory_space<vmem>>, vector<1x1x2x128xf32>
    %235 = vector.shape_cast %234 : vector<1x1x2x128xf32> to vector<2x128xf32>
    %236 = vector.broadcast %233 : vector<1x1xf32> to vector<2x128xf32>
    %237 = arith.mulf %236, %105 : vector<2x128xf32>
    %238 = arith.addf %235, %237 : vector<2x128xf32>
    %c0_118 = arith.constant 0 : index
    %c2_119 = arith.constant 2 : index
    %c0_120 = arith.constant 0 : index
    %c0_121 = arith.constant 0 : index
    %239 = vector.load %arg6[%c0_118, %c2_119, %c0_120, %c0_121] : memref<1x4x2x128xf32, #tpu.memory_space<vmem>>, vector<1x1x2x128xf32>
    %240 = vector.shape_cast %239 : vector<1x1x2x128xf32> to vector<2x128xf32>
    %241 = vector.shape_cast %238 : vector<2x128xf32> to vector<1x1x2x128xf32>
    tpu.vector_store %arg6[%c0_118, %c2_119, %c0_120, %c0_121], %241 {strides = array<i32>} : memref<1x4x2x128xf32, #tpu.memory_space<vmem>>, vector<1x1x2x128xf32>,
    %c3_122 = arith.constant 3 : index
    %c0_123 = arith.constant 0 : index
    %242 = memref.load %arg4[%c3_122, %c0_123] : memref<4x4xf32, #tpu.memory_space<smem>>
    %243 = vector.broadcast %242 : f32 to vector<1x1xf32>
    %244 = arith.mulf %243, %133 : vector<1x1xf32>
    %c3_124 = arith.constant 3 : index
    %c1_125 = arith.constant 1 : index
    %245 = memref.load %arg4[%c3_124, %c1_125] : memref<4x4xf32, #tpu.memory_space<smem>>
    %246 = vector.broadcast %245 : f32 to vector<1x1xf32>
    %247 = arith.mulf %246, %143 : vector<1x1xf32>
    %248 = arith.addf %244, %247 : vector<1x1xf32>
    %c3_126 = arith.constant 3 : index
    %c2_127 = arith.constant 2 : index
    %249 = memref.load %arg4[%c3_126, %c2_127] : memref<4x4xf32, #tpu.memory_space<smem>>
    %250 = vector.broadcast %249 : f32 to vector<1x1xf32>
    %251 = arith.mulf %250, %153 : vector<1x1xf32>
    %252 = arith.addf %248, %251 : vector<1x1xf32>
    %c3_128 = arith.constant 3 : index
    %c3_129 = arith.constant 3 : index
    %253 = memref.load %arg4[%c3_128, %c3_129] : memref<4x4xf32, #tpu.memory_space<smem>>
    %254 = vector.broadcast %253 : f32 to vector<1x1xf32>
    %255 = arith.mulf %254, %163 : vector<1x1xf32>
    %256 = arith.addf %252, %255 : vector<1x1xf32>
    %c3_130 = arith.constant 3 : index
    %257 = memref.load %arg5[%c3_130] : memref<4xf32, #tpu.memory_space<smem>>
    %258 = vector.broadcast %257 : f32 to vector<1x1xf32>
    %259 = arith.addf %256, %258 : vector<1x1xf32>
    %c0_131 = arith.constant 0 : index
    %c3_132 = arith.constant 3 : index
    %c0_133 = arith.constant 0 : index
    %c0_134 = arith.constant 0 : index
    %260 = vector.load %arg1[%c0_131, %c3_132, %c0_133, %c0_134] : memref<1x4x2x128xf32, #tpu.memory_space<vmem>>, vector<1x1x2x128xf32>
    %261 = vector.shape_cast %260 : vector<1x1x2x128xf32> to vector<2x128xf32>
    %262 = vector.broadcast %259 : vector<1x1xf32> to vector<2x128xf32>
    %263 = arith.mulf %262, %105 : vector<2x128xf32>
    %264 = arith.addf %261, %263 : vector<2x128xf32>
    %c0_135 = arith.constant 0 : index
    %c3_136 = arith.constant 3 : index
    %c0_137 = arith.constant 0 : index
    %c0_138 = arith.constant 0 : index
    %265 = vector.load %arg6[%c0_135, %c3_136, %c0_137, %c0_138] : memref<1x4x2x128xf32, #tpu.memory_space<vmem>>, vector<1x1x2x128xf32>
    %266 = vector.shape_cast %265 : vector<1x1x2x128xf32> to vector<2x128xf32>
    %267 = vector.shape_cast %264 : vector<2x128xf32> to vector<1x1x2x128xf32>
    tpu.vector_store %arg6[%c0_135, %c3_136, %c0_137, %c0_138], %267 {strides = array<i32>} : memref<1x4x2x128xf32, #tpu.memory_space<vmem>>, vector<1x1x2x128xf32>,
    return
  }
  func.func @transform_0(%arg0: i32) -> (i32, i32, i32, i32) {
    %c0_i32 = arith.constant 0 : i32
    %c0_i32_0 = arith.constant 0 : i32
    %c0_i32_1 = arith.constant 0 : i32
    %c0_i32_2 = arith.constant 0 : i32
    return %arg0, %c0_i32, %c0_i32_0, %c0_i32_1 : i32, i32, i32, i32
  }
  func.func @transform_1(%arg0: i32) -> (i32, i32) {
    %c0_i32 = arith.constant 0 : i32
    %c0_i32_0 = arith.constant 0 : i32
    %c0_i32_1 = arith.constant 0 : i32
    return %c0_i32, %c0_i32_0 : i32, i32
  }
  func.func @transform_2(%arg0: i32) -> i32 {
    %c0_i32 = arith.constant 0 : i32
    %c0_i32_0 = arith.constant 0 : i32
    return %c0_i32 : i32
  }
  func.func @transform_3(%arg0: i32) -> (i32, i32) {
    %c0_i32 = arith.constant 0 : i32
    %c0_i32_0 = arith.constant 0 : i32
    %c0_i32_1 = arith.constant 0 : i32
    return %c0_i32, %c0_i32_0 : i32, i32
  }
  func.func @transform_4(%arg0: i32) -> i32 {
    %c0_i32 = arith.constant 0 : i32
    %c0_i32_0 = arith.constant 0 : i32
    return %c0_i32 : i32
  }
  func.func @transform_5(%arg0: i32) -> (i32, i32, i32, i32) {
    %c0_i32 = arith.constant 0 : i32
    %c0_i32_0 = arith.constant 0 : i32
    %c0_i32_1 = arith.constant 0 : i32
    %c0_i32_2 = arith.constant 0 : i32
    return %arg0, %c0_i32, %c0_i32_0, %c0_i32_1 : i32, i32, i32, i32
  }
}

</mosaic_0001>

<llo_original>
// kernel: tpu_custom_call.1
$region0: #{tpu_custom_call.1}
  #allocation0 [shape = 'u32[]', space=smem, size = 0x4, offset = 0x4, fixed_abs, tag = 'smem constant byte address 0x4 - core index']
  #allocation1 [shape = 'u32[144,128]{1,0:T(1,128)}', space=vmem, size = 0x12000, scoped, tag = 'internal scratch']
  %s0 = inlined_call_operand.hbm [shape: f32[2,4,2,128], index: 0, kind: input, shape index: {}]
  %s1 = inlined_call_operand.vmem [shape: f32[8,4], index: 1, kind: input, shape index: {}]
  %s2 = inlined_call_operand.vmem [shape: f32[8], index: 2, kind: input, shape index: {}]
  %s3 = inlined_call_operand.vmem [shape: f32[4,4], index: 3, kind: input, shape index: {}]
  %s4 = inlined_call_operand.vmem [shape: f32[4], index: 4, kind: input, shape index: {}]
  %s5 = inlined_call_operand.hbm [shape: f32[2,4,2,128], index: 5, kind: output, shape index: {}]
  %s6 = sld [smem:[#allocation0]]
  $region73: #{tpu_custom_call.1} parent=0
    _
  %s8 = ssub.s32 1, %s6
  %s9 = scalar_select 0, %s8, %s6
  $region1: #{tpu_custom_call.1} parent=0
    #allocation2 [shape = 'u8[8192]{0}', space=vmem, size = 0x2000, scoped, tag = 'input window, operand 0']
    #allocation3 [shape = 's32[2]{0}', space=sflag, size = 0x8, scoped, tag = 'scoped memory for tpu_custom_call.1']
    #allocation4 [shape = 's32[2]{0}', space=sflag, size = 0x8, scoped, tag = 'scoped memory for tpu_custom_call.1']
    #allocation5 [shape = 's32[2]{0}', space=sflag, size = 0x8, scoped, tag = 'scoped memory for tpu_custom_call.1']
    #allocation6 [shape = 'u8[4096]{0}', space=smem, size = 0x1000, scoped, tag = 'input window, operand 1, single buffered']
    #allocation7 [shape = 'u8[512]{0}', space=smem, size = 0x200, scoped, tag = 'input window, operand 2, single buffered']
    #allocation8 [shape = 's32[1]{0}', space=sflag, size = 0x4, scoped, tag = 'scoped memory for tpu_custom_call.1']
    #allocation9 [shape = 'u8[2048]{0}', space=smem, size = 0x800, scoped, tag = 'input window, operand 3, single buffered']
    #allocation10 [shape = 'u8[512]{0}', space=smem, size = 0x200, scoped, tag = 'input window, operand 4, single buffered']
    #allocation11 [shape = 's32[1]{0}', space=sflag, size = 0x4, scoped, tag = 'scoped memory for tpu_custom_call.1']
    #allocation12 [shape = 'u8[8192]{0}', space=vmem, size = 0x2000, scoped, tag = 'output window, operand 0']
    %10 = vsyncpa [#allocation3], 0
    %s11 = scalar_lea.sflag [#allocation3], 1
    %12 = vsyncpa %s11, 0
    %13 = vsyncpa [#allocation5], 0
    %14 = vsyncpa [#allocation8], 0
    %15 = vsyncpa [#allocation11], 0
    %16 = vsyncpa [#allocation4], 0
    %s17 = scalar_lea.sflag [#allocation4], 1
    %18 = vsyncpa %s17, 0
    loop: start=0, step=1, limit=4
    $region2: #{tpu_custom_call.1} parent=1 // loop_pre_header
      _
    $region3: #{tpu_custom_call.1} parent=1 // loop_header
      %s20 = sphi 0, %s24
      %p21 = scmp.ge.s32.totalorder %s20, 4
      %s30 = sphi 0, %s32
      %s33 = sphi 0, %s30
      %s34 = sphi 0, %s33
      %s50 = sphi 0, %s34
      %s54 = sphi 0, %s54
      %s56 = sphi 0, %s54
      %s57 = sphi 0, %s56
      %s71 = sphi 0, %s57
      %s75 = sphi 0, %s75
      %s77 = sphi 0, %s75
      %s78 = sphi 0, %s77
      %s92 = sphi 0, %s78
      %s96 = sphi 0, %s96
      %s98 = sphi 0, %s96
      %s99 = sphi 0, %s98
      %s113 = sphi 0, %s99
      %s117 = sphi 0, %s117
      %s119 = sphi 0, %s117
      %s120 = sphi 0, %s119
      %s134 = sphi 0, %s120
      %s140 = sphi 0, %s142
      %s143 = sphi 0, %s140
      %s144 = sphi 0, %s143
      %s160 = sphi 0, %s144
    $region4: #{tpu_custom_call.1} parent=1 // loop_header_branch
      %23 = sbr.rel (%p21) target = $region8
    $region5: #{tpu_custom_call.1} parent=1 // loop_body
      %s25 = ssub.s32 %s20, 1
      %s26 = ssub.s32 %s20, 2
      %s27 = sadd.s32 %s20, 1
      %s28 = ssub.s32 %s20, %s27
      %p29 = scmp.eq.s32.totalorder %s28, 0
      %s31 = sadd.s32 %s30, 1
      %s32 = scalar_select %p29, %s30, %s31
      %p35 = pneg %p29
      %p36 = scmp.eq.s32.totalorder %s20, 1
      %p37 = por %p35, %p36
      %p38 = scmp.ne.s32.totalorder %s30, %s33
      %p39 = scmp.eq.s32.totalorder %s20, 0
      %p40 = por %p38, %p39
      %p41 = scmp.ne.s32.totalorder %s30, %s33
      %p42 = scmp.eq.s32.totalorder %s25, 1
      %p43 = por %p41, %p42
      %p44 = scmp.ne.s32.totalorder %s33, %s34
      %p45 = scmp.eq.s32.totalorder %s25, 0
      %p46 = por %p44, %p45
      %p47 = scmp.ne.s32.totalorder %s33, %s34
      %p48 = scmp.eq.s32.totalorder %s26, 1
      %p49 = por %p47, %p48
      %p51 = scmp.ne.s32.totalorder %s34, %s50
      %p52 = scmp.eq.s32.totalorder %s26, 0
      %p53 = por %p51, %p52
      %s55 = sadd.s32 %s54, 1
      %p58 = scmp.eq.s32.totalorder %s20, 1
      %p59 = scmp.ne.s32.totalorder %s54, %s56
      %p60 = scmp.eq.s32.totalorder %s20, 0
      %p61 = por %p59, %p60
      %p62 = scmp.ne.s32.totalorder %s54, %s56
      %p63 = scmp.eq.s32.totalorder %s25, 1
      %p64 = por %p62, %p63
      %p65 = scmp.ne.s32.totalorder %s56, %s57
      %p66 = scmp.eq.s32.totalorder %s25, 0
      %p67 = por %p65, %p66
      %p68 = scmp.ne.s32.totalorder %s56, %s57
      %p69 = scmp.eq.s32.totalorder %s26, 1
      %p70 = por %p68, %p69
      %p72 = scmp.ne.s32.totalorder %s57, %s71
      %p73 = scmp.eq.s32.totalorder %s26, 0
      %p74 = por %p72, %p73
      %s76 = sadd.s32 %s75, 1
      %p79 = scmp.eq.s32.totalorder %s20, 1
      %p80 = scmp.ne.s32.totalorder %s75, %s77
      %p81 = scmp.eq.s32.totalorder %s20, 0
      %p82 = por %p80, %p81
      %p83 = scmp.ne.s32.totalorder %s75, %s77
      %p84 = scmp.eq.s32.totalorder %s25, 1
      %p85 = por %p83, %p84
      %p86 = scmp.ne.s32.totalorder %s77, %s78
      %p87 = scmp.eq.s32.totalorder %s25, 0
      %p88 = por %p86, %p87
      %p89 = scmp.ne.s32.totalorder %s77, %s78
      %p90 = scmp.eq.s32.totalorder %s26, 1
      %p91 = por %p89, %p90
      %p93 = scmp.ne.s32.totalorder %s78, %s92
      %p94 = scmp.eq.s32.totalorder %s26, 0
      %p95 = por %p93, %p94
      %s97 = sadd.s32 %s96, 1
      %p100 = scmp.eq.s32.totalorder %s20, 1
      %p101 = scmp.ne.s32.totalorder %s96, %s98
      %p102 = scmp.eq.s32.totalorder %s20, 0
      %p103 = por %p101, %p102
      %p104 = scmp.ne.s32.totalorder %s96, %s98
      %p105 = scmp.eq.s32.totalorder %s25, 1
      %p106 = por %p104, %p105
      %p107 = scmp.ne.s32.totalorder %s98, %s99
      %p108 = scmp.eq.s32.totalorder %s25, 0
      %p109 = por %p107, %p108
      %p110 = scmp.ne.s32.totalorder %s98, %s99
      %p111 = scmp.eq.s32.totalorder %s26, 1
      %p112 = por %p110, %p111
      %p114 = scmp.ne.s32.totalorder %s99, %s113
      %p115 = scmp.eq.s32.totalorder %s26, 0
      %p116 = por %p114, %p115
      %s118 = sadd.s32 %s117, 1
      %p121 = scmp.eq.s32.totalorder %s20, 1
      %p122 = scmp.ne.s32.totalorder %s117, %s119
      %p123 = scmp.eq.s32.totalorder %s20, 0
      %p124 = por %p122, %p123
      %p125 = scmp.ne.s32.totalorder %s117, %s119
      %p126 = scmp.eq.s32.totalorder %s25, 1
      %p127 = por %p125, %p126
      %p128 = scmp.ne.s32.totalorder %s119, %s120
      %p129 = scmp.eq.s32.totalorder %s25, 0
      %p130 = por %p128, %p129
      %p131 = scmp.ne.s32.totalorder %s119, %s120
      %p132 = scmp.eq.s32.totalorder %s26, 1
      %p133 = por %p131, %p132
      %p135 = scmp.ne.s32.totalorder %s120, %s134
      %p136 = scmp.eq.s32.totalorder %s26, 0
      %p137 = por %p135, %p136
      %s138 = ssub.s32 %s20, %s27
      %p139 = scmp.eq.s32.totalorder %s138, 0
      %s141 = sadd.s32 %s140, 1
      %s142 = scalar_select %p139, %s140, %s141
      %p145 = pneg %p139
      %p146 = scmp.eq.s32.totalorder %s20, 1
      %p147 = por %p145, %p146
      %p148 = scmp.ne.s32.totalorder %s140, %s143
      %p149 = scmp.eq.s32.totalorder %s20, 0
      %p150 = por %p148, %p149
      %p151 = scmp.ne.s32.totalorder %s140, %s143
      %p152 = scmp.eq.s32.totalorder %s25, 1
      %p153 = por %p151, %p152
      %p154 = scmp.ne.s32.totalorder %s143, %s144
      %p155 = scmp.eq.s32.totalorder %s25, 0
      %p156 = por %p154, %p155
      %p157 = scmp.ne.s32.totalorder %s143, %s144
      %p158 = scmp.eq.s32.totalorder %s26, 1
      %p159 = por %p157, %p158
      %p161 = scmp.ne.s32.totalorder %s144, %s160
      %p162 = scmp.eq.s32.totalorder %s26, 0
      %p163 = por %p161, %p162
      %p164 = scmp.le.s32.totalorder 1, %s20
      %p165 = scmp.lt.s32.totalorder %s20, 3
      %p166 = pnand %p164, %p165
      %p167 = pneg %p166
      // Predicated region
      $region9: #{tpu_custom_call.1} parent=5 // pred_check
        _
      $region10: #{tpu_custom_call.1} parent=5 // pred_check_branch
        %169 = sbr.rel (%p166) target = $region12
      $region11: #{tpu_custom_call.1} parent=5 // pred_region
        %s170 = ssub.s32 %s20, 1
        // Predicated region
        $region13: #{tpu_custom_call.1} parent=11 // pred_check
          %p171 = pneg %p67
        $region14: #{tpu_custom_call.1} parent=11 // pred_check_branch
          %173 = sbr.rel (%p171) target = $region16
        $region15: #{tpu_custom_call.1} parent=11 // pred_region
          %s175 = ssub.s32 128, 128
          %176 = vsyncadd [#allocation5], %s175
          %s178 = sshll.u32 %s1, 4
          %s179 = int_to_ptr.vmem [resolvable:$true] %s178
          %181 = dma.vmem_to_smem %s179, 128, [#allocation6], [#allocation5]
        $region16: #{tpu_custom_call.1} parent=11 // pred_fallthru
          _
        // Predicated region
        $region17: #{tpu_custom_call.1} parent=11 // pred_check
          %p182 = pneg %p88
        $region18: #{tpu_custom_call.1} parent=11 // pred_check_branch
          %184 = sbr.rel (%p182) target = $region20
        $region19: #{tpu_custom_call.1} parent=11 // pred_region
          %s186 = ssub.s32 16, 16
          %187 = vsyncadd [#allocation8], %s186
          %s189 = sshll.u32 %s2, 4
          %s190 = int_to_ptr.vmem [resolvable:$true] %s189
          %192 = dma.vmem_to_smem %s190, 16, [#allocation7], [#allocation8]
        $region20: #{tpu_custom_call.1} parent=11 // pred_fallthru
          _
        // Predicated region
        $region21: #{tpu_custom_call.1} parent=11 // pred_check
          %p193 = pneg %p109
        $region22: #{tpu_custom_call.1} parent=11 // pred_check_branch
          %195 = sbr.rel (%p193) target = $region24
        $region23: #{tpu_custom_call.1} parent=11 // pred_region
          %s197 = ssub.s32 64, 64
          %198 = vsyncadd [#allocation8], %s197
          %s200 = sshll.u32 %s3, 4
          %s201 = int_to_ptr.vmem [resolvable:$true] %s200
          %203 = dma.vmem_to_smem %s201, 64, [#allocation9], [#allocation8]
        $region24: #{tpu_custom_call.1} parent=11 // pred_fallthru
          _
        // Predicated region
        $region25: #{tpu_custom_call.1} parent=11 // pred_check
          %p204 = pneg %p130
        $region26: #{tpu_custom_call.1} parent=11 // pred_check_branch
          %206 = sbr.rel (%p204) target = $region28
        $region27: #{tpu_custom_call.1} parent=11 // pred_region
          %s208 = ssub.s32 16, 16
          %209 = vsyncadd [#allocation11], %s208
          %s211 = sshll.u32 %s4, 4
          %s212 = int_to_ptr.vmem [resolvable:$true] %s211
          %214 = dma.vmem_to_smem %s212, 16, [#allocation10], [#allocation11]
        $region28: #{tpu_custom_call.1} parent=11 // pred_fallthru
          _
      $region12: #{tpu_custom_call.1} parent=5 // pred_fallthru
        _
      %p215 = scmp.lt.s32.totalorder %s20, 2
      // Predicated region
      $region29: #{tpu_custom_call.1} parent=5 // pred_check
        %p216 = pneg %p215
      $region30: #{tpu_custom_call.1} parent=5 // pred_check_branch
        %218 = sbr.rel (%p216) target = $region32
      $region31: #{tpu_custom_call.1} parent=5 // pred_region
        // Predicated region
        $region33: #{tpu_custom_call.1} parent=31 // pred_check
          %p219 = pneg %p40
        $region34: #{tpu_custom_call.1} parent=31 // pred_check_branch
          %221 = sbr.rel (%p219) target = $region36
        $region35: #{tpu_custom_call.1} parent=31 // pred_region
          %s222 = sand.u32 %s30, 1
          %s223 = scalar_lea.sflag [#allocation3], %s222
          %s224 = sand.u32 %s30, 1
          %s225 = smul.addr %s224, 8
          %s226 = scalar_lea.vmem [#allocation2], %s225
          %s228 = ssub.s32 128, 128
          %229 = vsyncadd %s223, %s228
          %s230 = smul.addr %s20, 4
          %s231 = smul.addr %s230, 32
          %s232 = scalar_lea.hbm %s0, %s231
          %s233 = sshll.u32 %s226, 4
          %s234 = int_to_ptr.vmem [resolvable:$true] %s233
          %239 = dma.hbm_to_vmem [thread:$0]  %s232, 128, %s234, %s223, 32, 32, 2
        $region36: #{tpu_custom_call.1} parent=31 // pred_fallthru
          _
      $region32: #{tpu_custom_call.1} parent=5 // pred_fallthru
        _
      %p240 = scmp.le.s32.totalorder 1, %s20
      %p241 = scmp.lt.s32.totalorder %s20, 3
      %p242 = pnand %p240, %p241
      %p243 = pneg %p242
      // Predicated region
      $region37: #{tpu_custom_call.1} parent=5 // pred_check
        _
      $region38: #{tpu_custom_call.1} parent=5 // pred_check_branch
        %245 = sbr.rel (%p242) target = $region40
      $region39: #{tpu_custom_call.1} parent=5 // pred_region
        %s246 = ssub.s32 %s20, 1
        %s247 = sand.u32 %s33, 1
        %s248 = scalar_lea.sflag [#allocation3], %s247
        %s249 = sand.u32 %s33, 1
        %s250 = smul.addr %s249, 8
        %s251 = scalar_lea.vmem [#allocation2], %s250
        // Predicated region
        $region41: #{tpu_custom_call.1} parent=39 // pred_check
          %p252 = pneg %p46
        $region42: #{tpu_custom_call.1} parent=39 // pred_check_branch
          %254 = sbr.rel (%p252) target = $region44
        $region43: #{tpu_custom_call.1} parent=39 // pred_region
          %255 = dma.done %s248, 128
        $region44: #{tpu_custom_call.1} parent=39 // pred_fallthru
          _
        // Predicated region
        $region45: #{tpu_custom_call.1} parent=39 // pred_check
          %p256 = pneg %p67
        $region46: #{tpu_custom_call.1} parent=39 // pred_check_branch
          %258 = sbr.rel (%p256) target = $region48
        $region47: #{tpu_custom_call.1} parent=39 // pred_region
          %259 = dma.done [#allocation5], 128
        $region48: #{tpu_custom_call.1} parent=39 // pred_fallthru
          _
        // Predicated region
        $region49: #{tpu_custom_call.1} parent=39 // pred_check
          %p260 = pneg %p88
        $region50: #{tpu_custom_call.1} parent=39 // pred_check_branch
          %262 = sbr.rel (%p260) target = $region52
        $region51: #{tpu_custom_call.1} parent=39 // pred_region
          %263 = dma.done [#allocation8], 16
        $region52: #{tpu_custom_call.1} parent=39 // pred_fallthru
          _
        // Predicated region
        $region53: #{tpu_custom_call.1} parent=39 // pred_check
          %p264 = pneg %p109
        $region54: #{tpu_custom_call.1} parent=39 // pred_check_branch
          %266 = sbr.rel (%p264) target = $region56
        $region55: #{tpu_custom_call.1} parent=39 // pred_region
          %267 = dma.done [#allocation8], 64
        $region56: #{tpu_custom_call.1} parent=39 // pred_fallthru
          _
        // Predicated region
        $region57: #{tpu_custom_call.1} parent=39 // pred_check
          %p268 = pneg %p130
        $region58: #{tpu_custom_call.1} parent=39 // pred_check_branch
          %270 = sbr.rel (%p268) target = $region60
        $region59: #{tpu_custom_call.1} parent=39 // pred_region
          %271 = dma.done [#allocation11], 16
        $region60: #{tpu_custom_call.1} parent=39 // pred_fallthru
          _
        %272 = sfence
        %s273 = sand.u32 %s33, 1
        %s274 = scalar_lea.sflag [#allocation3], %s273
        %s275 = sand.u32 %s33, 1
        %s276 = smul.addr %s275, 8
        %s277 = scalar_lea.vmem [#allocation2], %s276
        %p278 = pneg %p46
        %p279 = pneg %p43
        %p280 = pneg %p67
        %p281 = pneg %p64
        %p282 = pneg %p88
        %p283 = pneg %p85
        %p284 = pneg %p109
        %p285 = pneg %p106
        %p286 = pneg %p130
        %p287 = pneg %p127
        %p288 = pneg %p156
        %p289 = pneg %p153
        %s290 = sand.u32 %s143, 1
        %s291 = scalar_lea.sflag [#allocation4], %s290
        %s292 = sand.u32 %s143, 1
        %s293 = smul.addr %s292, 8
        %s294 = scalar_lea.vmem [#allocation12], %s293
        %v295 = vld [vmem:[%s251] sm:$0x3]
        %s296 = sld [smem:[#allocation6]]
        %v297 = vstv %s296
        %v298 = vmul.f32 %v297, %v295
        %s299 = sld [smem:[#allocation6 + $0x80]]
        %v300 = vstv %s299
        %v301 = vmul.f32 %v300, %v295
        %s302 = sld [smem:[#allocation6 + $0x100]]
        %v303 = vstv %s302
        %v304 = vmul.f32 %v303, %v295
        %s305 = sld [smem:[#allocation6 + $0x180]]
        %v306 = vstv %s305
        %v307 = vmul.f32 %v306, %v295
        %s308 = sld [smem:[#allocation6 + $0x200]]
        %v309 = vstv %s308
        %v310 = vmul.f32 %v309, %v295
        %s311 = sld [smem:[#allocation6 + $0x280]]
        %v312 = vstv %s311
        %v313 = vmul.f32 %v312, %v295
        %s314 = scalar_lea.vmem %s251, 2 [#allocation2]
        %v315 = vld [vmem:[%s314] sm:$0x3]
        %s316 = sld [smem:[#allocation6 + $0x1]]
        %v317 = vstv %s316
        %v318 = vmul.f32 %v317, %v315
        %v319 = vadd.f32 %v298, %v318
        %s320 = sld [smem:[#allocation6 + $0x81]]
        %v321 = vstv %s320
        %v322 = vmul.f32 %v321, %v315
        %v323 = vadd.f32 %v301, %v322
        %s324 = sld [smem:[#allocation6 + $0x101]]
        %v325 = vstv %s324
        %v326 = vmul.f32 %v325, %v315
        %v327 = vadd.f32 %v304, %v326
        %s328 = sld [smem:[#allocation6 + $0x181]]
        %v329 = vstv %s328
        %v330 = vmul.f32 %v329, %v315
        %v331 = vadd.f32 %v307, %v330
        %s332 = sld [smem:[#allocation6 + $0x201]]
        %v333 = vstv %s332
        %v334 = vmul.f32 %v333, %v315
        %v335 = vadd.f32 %v310, %v334
        %s336 = sld [smem:[#allocation6 + $0x281]]
        %v337 = vstv %s336
        %v338 = vmul.f32 %v337, %v315
        %v339 = vadd.f32 %v313, %v338
        %s340 = scalar_lea.vmem %s251, 4 [#allocation2]
        %v341 = vld [vmem:[%s340] sm:$0x3]
        %s342 = sld [smem:[#allocation6 + $0x2]]
        %v343 = vstv %s342
        %v344 = vmul.f32 %v343, %v341
        %v345 = vadd.f32 %v319, %v344
        %s346 = sld [smem:[#allocation6 + $0x82]]
        %v347 = vstv %s346
        %v348 = vmul.f32 %v347, %v341
        %v349 = vadd.f32 %v323, %v348
        %s350 = sld [smem:[#allocation6 + $0x102]]
        %v351 = vstv %s350
        %v352 = vmul.f32 %v351, %v341
        %v353 = vadd.f32 %v327, %v352
        %s354 = sld [smem:[#allocation6 + $0x182]]
        %v355 = vstv %s354
        %v356 = vmul.f32 %v355, %v341
        %v357 = vadd.f32 %v331, %v356
        %s358 = sld [smem:[#allocation6 + $0x202]]
        %v359 = vstv %s358
        %v360 = vmul.f32 %v359, %v341
        %v361 = vadd.f32 %v335, %v360
        %s362 = sld [smem:[#allocation6 + $0x282]]
        %v363 = vstv %s362
        %v364 = vmul.f32 %v363, %v341
        %v365 = vadd.f32 %v339, %v364
        %s366 = scalar_lea.vmem %s251, 6 [#allocation2]
        %v367 = vld [vmem:[%s366] sm:$0x3]
        %s368 = sld [smem:[#allocation6 + $0x3]]
        %v369 = vstv %s368
        %v370 = vmul.f32 %v369, %v367
        %v371 = vadd.f32 %v345, %v370
        %s372 = sld [smem:[#allocation6 + $0x83]]
        %v373 = vstv %s372
        %v374 = vmul.f32 %v373, %v367
        %v375 = vadd.f32 %v349, %v374
        %s376 = sld [smem:[#allocation6 + $0x103]]
        %v377 = vstv %s376
        %v378 = vmul.f32 %v377, %v367
        %v379 = vadd.f32 %v353, %v378
        %s380 = sld [smem:[#allocation6 + $0x183]]
        %v381 = vstv %s380
        %v382 = vmul.f32 %v381, %v367
        %v383 = vadd.f32 %v357, %v382
        %s384 = sld [smem:[#allocation6 + $0x203]]
        %v385 = vstv %s384
        %v386 = vmul.f32 %v385, %v367
        %v387 = vadd.f32 %v361, %v386
        %s388 = sld [smem:[#allocation6 + $0x283]]
        %v389 = vstv %s388
        %v390 = vmul.f32 %v389, %v367
        %v391 = vadd.f32 %v365, %v390
        %s392 = sld [smem:[#allocation7]]
        %v393 = vstv %s392
        %v394 = vadd.f32 %v371, %v393
        %v395 = vxor.u32 %v394, 2147483648
        %v396 = vmul.f32 %v395, 1.442695
        %v397 = vpow.pop %v396
        %v398 = vadd.f32 %v397, 1.0
        %v399 = vrcp.pop %v398
        %v400 = vmul.f32 1.0, %v399
        %s401 = sld [smem:[#allocation7 + $0x1]]
        %v402 = vstv %s401
        %v403 = vadd.f32 %v375, %v402
        %vm404 = vcmask 1041408
        %v405 = vsel %vm404, %v403, -inf
        %406 = vmax.xlane.f32.xlu0 %v405
        %v407 = vpop.xlane.xlu0 %406
        %v408 = vrot.slane %v407, 4
        %v409 = vmax.f32 %v407, %v408
        %v410 = vrot.slane %v409, 2
        %v411 = vmax.f32 %v409, %v410
        %v412 = vrot.slane %v411, 1
        %v413 = vmax.f32 %v411, %v412
        %s414 = vtos %v413
        %v415 = vstv %s414
        %v416 = vsub.f32 %v403, %v415
        %v417 = vmul.f32 %v416, 1.442695
        %v418 = vpow.pop %v417
        %v419 = vsel %vm404, %v418, 0.0
        %420 = vadd.xlane.f32.xlu0 %v419
        %v421 = vpop.xlane.xlu0 %420
        %v422 = vrot.slane %v421, 4
        %v423 = vadd.f32 %v421, %v422
        %v424 = vrot.slane %v423, 2
        %v425 = vadd.f32 %v423, %v424
        %v426 = vrot.slane %v425, 1
        %v427 = vadd.f32 %v425, %v426
        %s428 = vtos %v427
        %v429 = vstv %s428
        %v430 = vrcp.pop %v429
        %v431 = vmul.f32 1.0, %v430
        %s432 = sld [smem:[#allocation7 + $0x2]]
        %v433 = vstv %s432
        %v434 = vadd.f32 %v379, %v433
        %v435 = vmul.f32 %v434, %v418
        %v436 = vsel %vm404, %v435, 0.0
        %437 = vadd.xlane.f32.xlu0 %v436
        %v438 = vpop.xlane.xlu0 %437
        %v439 = vrot.slane %v438, 4
        %v440 = vadd.f32 %v438, %v439
        %v441 = vrot.slane %v440, 2
        %v442 = vadd.f32 %v440, %v441
        %v443 = vrot.slane %v442, 1
        %v444 = vadd.f32 %v442, %v443
        %s445 = vtos %v444
        %v446 = vstv %s445
        %v447 = vmul.f32 %v446, %v431
        %s448 = sld [smem:[#allocation7 + $0x3]]
        %v449 = vstv %s448
        %v450 = vadd.f32 %v383, %v449
        %v451 = vmul.f32 %v450, %v418
        %v452 = vsel %vm404, %v451, 0.0
        %453 = vadd.xlane.f32.xlu0 %v452
        %v454 = vpop.xlane.xlu0 %453
        %v455 = vrot.slane %v454, 4
        %v456 = vadd.f32 %v454, %v455
        %v457 = vrot.slane %v456, 2
        %v458 = vadd.f32 %v456, %v457
        %v459 = vrot.slane %v458, 1
        %v460 = vadd.f32 %v458, %v459
        %s461 = vtos %v460
        %v462 = vstv %s461
        %v463 = vmul.f32 %v462, %v431
        %s464 = sld [smem:[#allocation7 + $0x4]]
        %v465 = vstv %s464
        %v466 = vadd.f32 %v387, %v465
        %v467 = vmul.f32 %v466, %v418
        %v468 = vsel %vm404, %v467, 0.0
        %469 = vadd.xlane.f32.xlu0 %v468
        %v470 = vpop.xlane.xlu0 %469
        %v471 = vrot.slane %v470, 4
        %v472 = vadd.f32 %v470, %v471
        %v473 = vrot.slane %v472, 2
        %v474 = vadd.f32 %v472, %v473
        %v475 = vrot.slane %v474, 1
        %v476 = vadd.f32 %v474, %v475
        %s477 = vtos %v476
        %v478 = vstv %s477
        %v479 = vmul.f32 %v478, %v431
        %s480 = sld [smem:[#allocation7 + $0x5]]
        %v481 = vstv %s480
        %v482 = vadd.f32 %v391, %v481
        %v483 = vmul.f32 %v482, %v418
        %v484 = vsel %vm404, %v483, 0.0
        %485 = vadd.xlane.f32.xlu0 %v484
        %v486 = vpop.xlane.xlu0 %485
        %v487 = vrot.slane %v486, 4
        %v488 = vadd.f32 %v486, %v487
        %v489 = vrot.slane %v488, 2
        %v490 = vadd.f32 %v488, %v489
        %v491 = vrot.slane %v490, 1
        %v492 = vadd.f32 %v490, %v491
        %s493 = vtos %v492
        %v494 = vstv %s493
        %v495 = vmul.f32 %v494, %v431
        %s496 = sld [smem:[#allocation9]]
        %v497 = vstv %s496
        %v498 = vmul.f32 %v497, %v447
        %s499 = sld [smem:[#allocation9 + $0x1]]
        %v500 = vstv %s499
        %v501 = vmul.f32 %v500, %v463
        %v502 = vadd.f32 %v498, %v501
        %s503 = sld [smem:[#allocation9 + $0x2]]
        %v504 = vstv %s503
        %v505 = vmul.f32 %v504, %v479
        %v506 = vadd.f32 %v502, %v505
        %s507 = sld [smem:[#allocation9 + $0x3]]
        %v508 = vstv %s507
        %v509 = vmul.f32 %v508, %v495
        %v510 = vadd.f32 %v506, %v509
        %s511 = sld [smem:[#allocation10]]
        %v512 = vstv %s511
        %v513 = vadd.f32 %v510, %v512
        %v514 = vmul.f32 %v513, %v400
        %v515 = vadd.f32 %v295, %v514
        %516 = vst [vmem:[%s294] sm:$0x3] %v515
        %s517 = sld [smem:[#allocation9 + $0x80]]
        %v518 = vstv %s517
        %v519 = vmul.f32 %v518, %v447
        %s520 = sld [smem:[#allocation9 + $0x81]]
        %v521 = vstv %s520
        %v522 = vmul.f32 %v521, %v463
        %v523 = vadd.f32 %v519, %v522
        %s524 = sld [smem:[#allocation9 + $0x82]]
        %v525 = vstv %s524
        %v526 = vmul.f32 %v525, %v479
        %v527 = vadd.f32 %v523, %v526
        %s528 = sld [smem:[#allocation9 + $0x83]]
        %v529 = vstv %s528
        %v530 = vmul.f32 %v529, %v495
        %v531 = vadd.f32 %v527, %v530
        %s532 = sld [smem:[#allocation10 + $0x1]]
        %v533 = vstv %s532
        %v534 = vadd.f32 %v531, %v533
        %v535 = vld [vmem:[%s314] sm:$0x3]
        %v536 = vmul.f32 %v534, %v400
        %v537 = vadd.f32 %v535, %v536
        %s538 = scalar_lea.vmem %s294, 2 [#allocation12]
        %539 = vst [vmem:[%s538] sm:$0x3] %v537
        %s540 = sld [smem:[#allocation9 + $0x100]]
        %v541 = vstv %s540
        %v542 = vmul.f32 %v541, %v447
        %s543 = sld [smem:[#allocation9 + $0x101]]
        %v544 = vstv %s543
        %v545 = vmul.f32 %v544, %v463
        %v546 = vadd.f32 %v542, %v545
        %s547 = sld [smem:[#allocation9 + $0x102]]
        %v548 = vstv %s547
        %v549 = vmul.f32 %v548, %v479
        %v550 = vadd.f32 %v546, %v549
        %s551 = sld [smem:[#allocation9 + $0x103]]
        %v552 = vstv %s551
        %v553 = vmul.f32 %v552, %v495
        %v554 = vadd.f32 %v550, %v553
        %s555 = sld [smem:[#allocation10 + $0x2]]
        %v556 = vstv %s555
        %v557 = vadd.f32 %v554, %v556
        %v558 = vld [vmem:[%s340] sm:$0x3]
        %v559 = vmul.f32 %v557, %v400
        %v560 = vadd.f32 %v558, %v559
        %s561 = scalar_lea.vmem %s294, 4 [#allocation12]
        %562 = vst [vmem:[%s561] sm:$0x3] %v560
        %s563 = sld [smem:[#allocation9 + $0x180]]
        %v564 = vstv %s563
        %v565 = vmul.f32 %v564, %v447
        %s566 = sld [smem:[#allocation9 + $0x181]]
        %v567 = vstv %s566
        %v568 = vmul.f32 %v567, %v463
        %v569 = vadd.f32 %v565, %v568
        %s570 = sld [smem:[#allocation9 + $0x182]]
        %v571 = vstv %s570
        %v572 = vmul.f32 %v571, %v479
        %v573 = vadd.f32 %v569, %v572
        %s574 = sld [smem:[#allocation9 + $0x183]]
        %v575 = vstv %s574
        %v576 = vmul.f32 %v575, %v495
        %v577 = vadd.f32 %v573, %v576
        %s578 = sld [smem:[#allocation10 + $0x3]]
        %v579 = vstv %s578
        %v580 = vadd.f32 %v577, %v579
        %v581 = vld [vmem:[%s366] sm:$0x3]
        %v582 = vmul.f32 %v580, %v400
        %v583 = vadd.f32 %v581, %v582
        %s584 = scalar_lea.vmem %s294, 6 [#allocation12]
        %585 = vst [vmem:[%s584] sm:$0x3] %v583
        %s586 = sand.u32 %s143, 1
        %s587 = scalar_lea.sflag [#allocation4], %s586
        %s588 = sand.u32 %s143, 1
        %s589 = smul.addr %s588, 8
        %s590 = scalar_lea.vmem [#allocation12], %s589
        // Predicated region
        $region61: #{tpu_custom_call.1} parent=39 // pred_check
          %p591 = pneg %p153
        $region62: #{tpu_custom_call.1} parent=39 // pred_check_branch
          %593 = sbr.rel (%p591) target = $region64
        $region63: #{tpu_custom_call.1} parent=39 // pred_region
          %s595 = ssub.s32 128, 128
          %596 = vsyncadd %s587, %s595
          %s597 = smul.addr %s25, 4
          %s598 = smul.addr %s597, 32
          %s599 = scalar_lea.hbm %s5, %s598
          %s600 = sshll.u32 %s590, 4
          %s601 = int_to_ptr.vmem [resolvable:$true] %s600
          %606 = dma.vmem_to_hbm [thread:$0]  %s601, 128, %s599, %s587, 32, 32, 2
        $region64: #{tpu_custom_call.1} parent=39 // pred_fallthru
          _
      $region40: #{tpu_custom_call.1} parent=5 // pred_fallthru
        _
      %p607 = scmp.le.s32.totalorder 2, %s20
      // Predicated region
      $region65: #{tpu_custom_call.1} parent=5 // pred_check
        %p608 = pneg %p607
      $region66: #{tpu_custom_call.1} parent=5 // pred_check_branch
        %610 = sbr.rel (%p608) target = $region68
      $region67: #{tpu_custom_call.1} parent=5 // pred_region
        %s611 = ssub.s32 %s20, 2
        // Predicated region
        $region69: #{tpu_custom_call.1} parent=67 // pred_check
          %p612 = pneg %p159
        $region70: #{tpu_custom_call.1} parent=67 // pred_check_branch
          %614 = sbr.rel (%p612) target = $region72
        $region71: #{tpu_custom_call.1} parent=67 // pred_region
          %s615 = sand.u32 %s144, 1
          %s616 = scalar_lea.sflag [#allocation4], %s615
          %s617 = sand.u32 %s144, 1
          %s618 = smul.addr %s617, 8
          %s619 = scalar_lea.vmem [#allocation12], %s618
          %620 = dma.done %s616, 128
        $region72: #{tpu_custom_call.1} parent=67 // pred_fallthru
          _
      $region68: #{tpu_custom_call.1} parent=5 // pred_fallthru
        _
    $region6: #{tpu_custom_call.1} parent=1 // loop_footer
      %s24 = sadd.s32 1, %s20
    $region7: #{tpu_custom_call.1} parent=1 // loop_footer_branch
      %19 = sbr.rel target = $region3
    $region8: #{tpu_custom_call.1} parent=1 // loop_exit
      _
    %621 = vsyncpa [#allocation3], 1
    %s622 = scalar_lea.sflag [#allocation3], 1
    %623 = vsyncpa %s622, 1
    %624 = vsyncpa [#allocation4], 1
    %s625 = scalar_lea.sflag [#allocation4], 1
    %626 = vsyncpa %s625, 1
    %627 = vsyncpa [#allocation5], 1
    %s628 = scalar_lea.sflag [#allocation5], 1
    %629 = vsyncpa %s628, 1
    %630 = vsyncpa [#allocation8], 1
    %631 = vsyncpa [#allocation11], 1

</llo_original>
